<compile_context>
chip_gen: v7x
topology: tpu7x:2x2x1
jax: 0.10.0
libtpu: 0.0.40
codegen_flags: <defaults>
</compile_context>

<pallas_src>
import functools
import math

import numpy as np
import jax
import jax.numpy as jnp
from jax.experimental import pallas as pl
from jax.experimental.pallas import tpu as pltpu


def _round_up(x, m):
    return ((x + m - 1) // m) * m


def build_isith_filters(ntau=5, tau_min=1.0, tau_max=40.0, buff_max=80,
                        k=10, dt=1, g=0.0):
    """Deterministic iSITH filter bank phi (UNflipped), shape [ntau, L].

    phi_n(t) = (1/tau*_n) * k^(k+1)/k! * (t/tau*_n)^k * exp(-k t / tau*_n),
    t = dt, 2dt, ..., buff_max; scaled by tau*_n**g and dt.  (iSITH stores the
    time-reversed copy for F.conv2d; here the kernel performs the causal
    convolution explicitly, so phi is consumed directly.)
    """
    c = (tau_max / tau_min) ** (1.0 / (ntau - 1)) - 1.0
    tau_star = tau_min * (1.0 + c) ** np.arange(ntau, dtype=np.float64)   # [ntau]
    times = np.arange(dt, buff_max + dt, dt, dtype=np.float64)            # [L]
    ts = tau_star[:, None]
    tt = times[None, :]
    phi = (1.0 / ts) * (k ** (k + 1) / math.factorial(k)) \
        * (tt / ts) ** k * np.exp(-k * tt / ts)
    phi = phi * (ts ** g) * dt
    return np.asarray(phi, dtype=np.float32)                              # [ntau, L]


def _build_causal_toeplitz_fused(phi, s_pad):
    """Fused banded Toeplitz: Wf[s, n*s_pad + t] = phi[n, t - s] for 0<=t-s<L.

    Then  out[r, n*s_pad + t] = sum_s x[r, s] * Wf[s, n*s_pad + t]  is the
    causal convolution with the left zero-padding folded into the band.
    """
    phi = np.asarray(phi, dtype=np.float32)
    ntau, L = phi.shape
    W = np.zeros((ntau, s_pad, s_pad), dtype=np.float32)
    for s in range(s_pad):
        width = min(L, s_pad - s)
        W[:, s, s:s + width] = phi[:, :width]
    Wf = np.transpose(W, (1, 0, 2)).reshape(s_pad, ntau * s_pad)
    return jnp.asarray(Wf)


def _isith_kernel(x_ref, w_ref, o_ref, *, fuse):
    # x_ref : [bpt, ft, S_pad]            input rows (compute dtype, bf16)
    # w_ref : [S_pad, ntau*S_pad]         fused causal-Toeplitz bank (resident)
    # o_ref : [bpt, ntau, ft, S_pad]      output block, final NCHW layout,
    #                                     time lane-dense (unmasked stores)
    bpt, ft, s_pad = x_ref.shape
    ntau = o_ref.shape[1]
    x = x_ref[...].reshape(bpt * ft, s_pad)            # layout-free merge (ft % 8 == 0)
    if fuse:
        # Short sequences: one MXU pass with N = ntau*S_pad, then ntau
        # lane-aligned column slices written to the ntau output slabs.
        res = jnp.dot(x, w_ref[...], preferred_element_type=jnp.float32)
        for n in range(ntau):                          # ntau is tiny: static unroll
            o_ref[:, n, :, :] = (
                res[:, n * s_pad:(n + 1) * s_pad]
                .reshape(bpt, ft, s_pad).astype(o_ref.dtype))
    else:
        # Long sequences: per-filter matmul, still lane-aligned W column slices.
        for n in range(ntau):
            res = jnp.dot(x, w_ref[:, n * s_pad:(n + 1) * s_pad],
                          preferred_element_type=jnp.float32)
            o_ref[:, n, :, :] = res.reshape(bpt, ft, s_pad).astype(o_ref.dtype)


def vanilla_isith_forward(x, phi, *, row_target=256,
                          out_dtype=jnp.bfloat16,
                          compute_dtype=jnp.bfloat16):
    """x: [B, 1, F, S] (NCHW, single channel).  phi: [ntau, L] filter bank.
    Returns [B, ntau, F, S] in `out_dtype` — same shape/semantics as
    Vanilla_iSITH.forward (bf16 storage by default per the roofline analysis;
    pass out_dtype=jnp.float32 for bit-heavier parity with the torch module)."""
    B, C, F, S = x.shape
    assert C == 1, "iSITH expects a single input channel"
    ntau, L = phi.shape

    # --- padding / tiling choices -------------------------------------------
    S_pad = _round_up(S, 128)                 # lane-dense stores, aligned MXU K/N
    F_pad8 = _round_up(F, 8)                  # sublane alignment
    if F_pad8 >= row_target:
        ft = row_target                       # tile within the feature axis
        F_pad = _round_up(F, ft)
        bpt = 1
    else:
        ft = F_pad8                           # whole (padded) feature axis per block
        F_pad = F_pad8
        bpt = max(1, min(B, row_target // ft))  # fold batches into the row axis
    B_pad = _round_up(B, bpt)
    fuse = S_pad <= 256                       # fuse the ntau filters along N

    # --- host-built, fixed (non-learned) banded weight -----------------------
    Wf = _build_causal_toeplitz_fused(phi, S_pad).astype(compute_dtype)  # [S_pad, ntau*S_pad]

    # --- input: drop channel dim, cast once, zero-pad to the tiled shape -----
    x_rows = x[:, 0].astype(compute_dtype)                               # [B, F, S]
    pads = ((0, B_pad - B), (0, F_pad - F), (0, S_pad - S))
    if any(p[1] for p in pads):
        x_rows = jnp.pad(x_rows, pads)

    # --- VMEM budget / cost hint ---------------------------------------------
    out_isz = jnp.dtype(out_dtype).itemsize
    in_block = bpt * ft * S_pad * 2
    out_block = bpt * ntau * ft * S_pad * out_isz
    w_bytes = S_pad * ntau * S_pad * 2
    vmem_limit = int(min(max(32 << 20,
                             2 * (in_block + out_block) + 2 * w_bytes + (4 << 20)),
                         64 << 20))           # stay within v7x physical VMEM
    flops = 2 * (B_pad * F_pad) * S_pad * (ntau * S_pad)
    bytes_accessed = (B_pad * F_pad * S_pad * 2 + w_bytes
                      + B_pad * ntau * F_pad * S_pad * out_isz)

    kernel = functools.partial(_isith_kernel, fuse=fuse)

    out = pl.pallas_call(
        kernel,
        out_shape=jax.ShapeDtypeStruct((B_pad, ntau, F_pad, S_pad), out_dtype),
        grid=(B_pad // bpt, F_pad // ft),
        in_specs=[
            pl.BlockSpec((bpt, ft, S_pad), lambda b, f: (b, f, 0)),
            pl.BlockSpec((S_pad, ntau * S_pad), lambda b, f: (0, 0)),   # resident
        ],
        out_specs=pl.BlockSpec((bpt, ntau, ft, S_pad),
                               lambda b, f: (b, 0, f, 0)),
        compiler_params=pltpu.CompilerParams(
            dimension_semantics=("parallel", "parallel"),
            vmem_limit_bytes=vmem_limit),
        cost_estimate=pl.CostEstimate(flops=int(flops), transcendentals=0,
                                      bytes_accessed=int(bytes_accessed)),
    )(x_rows, Wf)

    return out[:B, :, :F, :S]


def _reference_forward(x_f32, phi_f32, compute_dtype):
    """Numpy/float64 causal-conv reference on the compute-dtype-quantized inputs."""
    xq = np.asarray(
        jnp.asarray(x_f32).astype(compute_dtype).astype(jnp.float32),
        dtype=np.float64)
    pq = np.asarray(
        jnp.asarray(phi_f32).astype(compute_dtype).astype(jnp.float32),
        dtype=np.float64)
    B, _, F, S = xq.shape
    ntau, L = pq.shape
    out = np.zeros((B, ntau, F, S))
    for t in range(S):
        for m in range(min(t, L - 1) + 1):
            out[:, :, :, t] += xq[:, 0, :, t - m][:, None, :] * pq[None, :, m, None]
    return out


if __name__ == "__main__":
    key = jax.random.PRNGKey(0)
    B, F, S = 2, 4, 16
    x = jax.random.normal(key, (B, 1, F, S), dtype=jnp.float32)

    # Module defaults: ntau=5, tau_min=1, tau_max=40, buff_max=80, k=10, dt=1, g=0
    phi = build_isith_filters(ntau=5, tau_min=1, tau_max=40, buff_max=80,
                              k=10, dt=1, g=0)

    y = vanilla_isith_forward(x, phi)        # bf16 output by default
    y = jax.block_until_ready(y)
    assert y.shape == (B, 5, F, S), y.shape

    ref = _reference_forward(np.asarray(x), phi, jnp.bfloat16)
    y_np = np.asarray(y.astype(jnp.float32), dtype=np.float64)
    # Tolerance covers bf16 input/weight quantization (shared with the
    # reference) plus the final bf16 rounding of the f32-accumulated output.
    np.testing.assert_allclose(y_np, ref, rtol=2e-2, atol=2e-3)
    print("KERNEL_OK")
</pallas_src>

<mosaic_0001>
module attributes {stable_mosaic.version = 11 : i64} {
  func.func @_isith_kernel(%arg0: i32, %arg1: i32, %arg2: memref<2x8x128xbf16, #tpu.memory_space<vmem>>, %arg3: memref<128x640xbf16, #tpu.memory_space<vmem>>, %arg4: memref<2x5x8x128xbf16, #tpu.memory_space<vmem>>) attributes {dimension_semantics = [#tpu.dimension_semantics<parallel>, #tpu.dimension_semantics<parallel>], iteration_bounds = array<i64: 1, 1>, scalar_prefetch = 0 : i64, scratch_operands = 0 : i64, tpu.core_type = #tpu.core_type<tc>, window_params = [{transform_indices = @transform_0, window_bounds = array<i64: 2, 8, 128>}, {pipeline_mode = #tpu.pipeline_mode<synchronous>, transform_indices = @transform_1, window_bounds = array<i64: 128, 640>}, {transform_indices = @transform_2, window_bounds = array<i64: 2, 5, 8, 128>}]} {
    %c0 = arith.constant 0 : index
    %c0_0 = arith.constant 0 : index
    %c0_1 = arith.constant 0 : index
    %0 = vector.load %arg2[%c0, %c0_0, %c0_1] : memref<2x8x128xbf16, #tpu.memory_space<vmem>>, vector<2x8x128xbf16>
    %1 = vector.shape_cast %0 : vector<2x8x128xbf16> to vector<16x128xbf16>
    %c0_2 = arith.constant 0 : index
    %c0_3 = arith.constant 0 : index
    %2 = vector.load %arg3[%c0_2, %c0_3] : memref<128x640xbf16, #tpu.memory_space<vmem>>, vector<128x640xbf16>
    %cst = arith.constant dense<0.000000e+00> : vector<16x640xf32>
    %3 = tpu.matmul %1, %2, %cst {dimension_numbers = #tpu.dot_dimension_numbers<[1], [0], [0], [1], [0, 0, 1, 1], [], []>} : vector<16x128xbf16>, vector<128x640xbf16>, vector<16x640xf32> -> vector<16x640xf32>
    %4 = vector.extract_strided_slice %3 {offsets = [0, 0], sizes = [16, 128], strides = [1, 1]} : vector<16x640xf32> to vector<16x128xf32>
    %5 = vector.shape_cast %4 : vector<16x128xf32> to vector<2x8x128xf32>
    %6 = arith.truncf %5 : vector<2x8x128xf32> to vector<2x8x128xbf16>
    %c0_4 = arith.constant 0 : index
    %c0_5 = arith.constant 0 : index
    %c0_6 = arith.constant 0 : index
    %c0_7 = arith.constant 0 : index
    %7 = vector.load %arg4[%c0_4, %c0_5, %c0_6, %c0_7] : memref<2x5x8x128xbf16, #tpu.memory_space<vmem>>, vector<2x1x8x128xbf16>
    %8 = vector.shape_cast %7 : vector<2x1x8x128xbf16> to vector<2x8x128xbf16>
    %9 = vector.shape_cast %6 : vector<2x8x128xbf16> to vector<2x1x8x128xbf16>
    tpu.vector_store %arg4[%c0_4, %c0_5, %c0_6, %c0_7], %9 {strides = array<i32>} : memref<2x5x8x128xbf16, #tpu.memory_space<vmem>>, vector<2x1x8x128xbf16>,
    %10 = vector.extract_strided_slice %3 {offsets = [0, 128], sizes = [16, 128], strides = [1, 1]} : vector<16x640xf32> to vector<16x128xf32>
    %11 = vector.shape_cast %10 : vector<16x128xf32> to vector<2x8x128xf32>
    %12 = arith.truncf %11 : vector<2x8x128xf32> to vector<2x8x128xbf16>
    %c0_8 = arith.constant 0 : index
    %c1 = arith.constant 1 : index
    %c0_9 = arith.constant 0 : index
    %c0_10 = arith.constant 0 : index
    %13 = vector.load %arg4[%c0_8, %c1, %c0_9, %c0_10] : memref<2x5x8x128xbf16, #tpu.memory_space<vmem>>, vector<2x1x8x128xbf16>
    %14 = vector.shape_cast %13 : vector<2x1x8x128xbf16> to vector<2x8x128xbf16>
    %15 = vector.shape_cast %12 : vector<2x8x128xbf16> to vector<2x1x8x128xbf16>
    tpu.vector_store %arg4[%c0_8, %c1, %c0_9, %c0_10], %15 {strides = array<i32>} : memref<2x5x8x128xbf16, #tpu.memory_space<vmem>>, vector<2x1x8x128xbf16>,
    %16 = vector.extract_strided_slice %3 {offsets = [0, 256], sizes = [16, 128], strides = [1, 1]} : vector<16x640xf32> to vector<16x128xf32>
    %17 = vector.shape_cast %16 : vector<16x128xf32> to vector<2x8x128xf32>
    %18 = arith.truncf %17 : vector<2x8x128xf32> to vector<2x8x128xbf16>
    %c0_11 = arith.constant 0 : index
    %c2 = arith.constant 2 : index
    %c0_12 = arith.constant 0 : index
    %c0_13 = arith.constant 0 : index
    %19 = vector.load %arg4[%c0_11, %c2, %c0_12, %c0_13] : memref<2x5x8x128xbf16, #tpu.memory_space<vmem>>, vector<2x1x8x128xbf16>
    %20 = vector.shape_cast %19 : vector<2x1x8x128xbf16> to vector<2x8x128xbf16>
    %21 = vector.shape_cast %18 : vector<2x8x128xbf16> to vector<2x1x8x128xbf16>
    tpu.vector_store %arg4[%c0_11, %c2, %c0_12, %c0_13], %21 {strides = array<i32>} : memref<2x5x8x128xbf16, #tpu.memory_space<vmem>>, vector<2x1x8x128xbf16>,
    %22 = vector.extract_strided_slice %3 {offsets = [0, 384], sizes = [16, 128], strides = [1, 1]} : vector<16x640xf32> to vector<16x128xf32>
    %23 = vector.shape_cast %22 : vector<16x128xf32> to vector<2x8x128xf32>
    %24 = arith.truncf %23 : vector<2x8x128xf32> to vector<2x8x128xbf16>
    %c0_14 = arith.constant 0 : index
    %c3 = arith.constant 3 : index
    %c0_15 = arith.constant 0 : index
    %c0_16 = arith.constant 0 : index
    %25 = vector.load %arg4[%c0_14, %c3, %c0_15, %c0_16] : memref<2x5x8x128xbf16, #tpu.memory_space<vmem>>, vector<2x1x8x128xbf16>
    %26 = vector.shape_cast %25 : vector<2x1x8x128xbf16> to vector<2x8x128xbf16>
    %27 = vector.shape_cast %24 : vector<2x8x128xbf16> to vector<2x1x8x128xbf16>
    tpu.vector_store %arg4[%c0_14, %c3, %c0_15, %c0_16], %27 {strides = array<i32>} : memref<2x5x8x128xbf16, #tpu.memory_space<vmem>>, vector<2x1x8x128xbf16>,
    %28 = vector.extract_strided_slice %3 {offsets = [0, 512], sizes = [16, 128], strides = [1, 1]} : vector<16x640xf32> to vector<16x128xf32>
    %29 = vector.shape_cast %28 : vector<16x128xf32> to vector<2x8x128xf32>
    %30 = arith.truncf %29 : vector<2x8x128xf32> to vector<2x8x128xbf16>
    %c0_17 = arith.constant 0 : index
    %c4 = arith.constant 4 : index
    %c0_18 = arith.constant 0 : index
    %c0_19 = arith.constant 0 : index
    %31 = vector.load %arg4[%c0_17, %c4, %c0_18, %c0_19] : memref<2x5x8x128xbf16, #tpu.memory_space<vmem>>, vector<2x1x8x128xbf16>
    %32 = vector.shape_cast %31 : vector<2x1x8x128xbf16> to vector<2x8x128xbf16>
    %33 = vector.shape_cast %30 : vector<2x8x128xbf16> to vector<2x1x8x128xbf16>
    tpu.vector_store %arg4[%c0_17, %c4, %c0_18, %c0_19], %33 {strides = array<i32>} : memref<2x5x8x128xbf16, #tpu.memory_space<vmem>>, vector<2x1x8x128xbf16>,
    return
  }
  func.func @transform_0(%arg0: i32, %arg1: i32) -> (i32, i32, i32) {
    %c0_i32 = arith.constant 0 : i32
    %c0_i32_0 = arith.constant 0 : i32
    return %arg0, %arg1, %c0_i32 : i32, i32, i32
  }
  func.func @transform_1(%arg0: i32, %arg1: i32) -> (i32, i32) {
    %c0_i32 = arith.constant 0 : i32
    %c0_i32_0 = arith.constant 0 : i32
    %c0_i32_1 = arith.constant 0 : i32
    return %c0_i32, %c0_i32_0 : i32, i32
  }
  func.func @transform_2(%arg0: i32, %arg1: i32) -> (i32, i32, i32, i32) {
    %c0_i32 = arith.constant 0 : i32
    %c0_i32_0 = arith.constant 0 : i32
    %c0_i32_1 = arith.constant 0 : i32
    return %arg0, %c0_i32, %arg1, %c0_i32_0 : i32, i32, i32, i32
  }
}

</mosaic_0001>

<llo_original>
// kernel: tpu_custom_call.1
$region0: #{tpu_custom_call.1}
  #allocation0 [shape = 'u32[]', space=smem, size = 0x4, offset = 0x4, fixed_abs, tag = 'smem constant byte address 0x4 - core index']
  #allocation1 [shape = 'u32[144,128]{1,0:T(1,128)}', space=vmem, size = 0x12000, scoped, tag = 'internal scratch']
  %s0 = inlined_call_operand.hbm [shape: bf16[2,8,128], index: 0, kind: input, shape index: {}]
  %s1 = inlined_call_operand.hbm [shape: bf16[128,640], index: 1, kind: input, shape index: {}]
  %s2 = inlined_call_operand.hbm [shape: bf16[2,5,8,128], index: 2, kind: output, shape index: {}]
  %s3 = sld [smem:[#allocation0]]
  $region26: #{tpu_custom_call.1} parent=0
    _
  %s5 = ssub.s32 1, %s3
  %s6 = scalar_select 0, %s5, %s3
  $region1: #{tpu_custom_call.1} parent=0
    #allocation2 [shape = 'u8[4096]{0}', space=vmem, size = 0x1000, scoped, tag = 'input window, operand 0, single buffered']
    #allocation3 [shape = 's32[1]{0}', space=sflag, size = 0x4, scoped, tag = 'scoped memory for tpu_custom_call.1']
    #allocation4 [shape = 's32[1]{0}', space=sflag, size = 0x4, scoped, tag = 'scoped memory for tpu_custom_call.1']
    #allocation5 [shape = 'u8[163840]{0}', space=vmem, size = 0x28000, scoped, tag = 'input window, operand 1, single buffered']
    #allocation6 [shape = 's32[1]{0}', space=sflag, size = 0x4, scoped, tag = 'scoped memory for tpu_custom_call.1']
    #allocation7 [shape = 'u8[20480]{0}', space=vmem, size = 0x5000, scoped, tag = 'output window, operand 0, single buffered']
    %7 = vsyncpa [#allocation3], 0
    %8 = vsyncpa [#allocation6], 0
    %9 = vsyncpa [#allocation4], 0
    // Predicated region
    $region2: #{tpu_custom_call.1} parent=1 // pred_check
      _
    $region3: #{tpu_custom_call.1} parent=1 // pred_check_branch
      %11 = sbr.rel (0) target = $region5
    $region4: #{tpu_custom_call.1} parent=1 // pred_region
      %s13 = ssub.s32 128, 128
      %14 = vsyncadd [#allocation3], %s13
      %s15 = sshll.u32 [#allocation2], 4
      %s16 = int_to_ptr.vmem [resolvable:$true] %s15
      %21 = dma.hbm_to_vmem [thread:$0]  %s0, 128, %s16, [#allocation3], 64, 64, 4
    $region5: #{tpu_custom_call.1} parent=1 // pred_fallthru
      _
    // Predicated region
    $region6: #{tpu_custom_call.1} parent=1 // pred_check
      _
    $region7: #{tpu_custom_call.1} parent=1 // pred_check_branch
      %23 = sbr.rel (0) target = $region9
    $region8: #{tpu_custom_call.1} parent=1 // pred_region
      %s25 = ssub.s32 5120, 5120
      %26 = vsyncadd [#allocation6], %s25
      %s27 = sshll.u32 [#allocation5], 4
      %s28 = int_to_ptr.vmem [resolvable:$true] %s27
      %33 = dma.hbm_to_vmem [thread:$0]  %s1, 5120, %s28, [#allocation6], 320, 320, 20
    $region9: #{tpu_custom_call.1} parent=1 // pred_fallthru
      _
    // Predicated region
    $region10: #{tpu_custom_call.1} parent=1 // pred_check
      _
    $region11: #{tpu_custom_call.1} parent=1 // pred_check_branch
      %35 = sbr.rel (0) target = $region13
    $region12: #{tpu_custom_call.1} parent=1 // pred_region
      %36 = dma.done [#allocation3], 128
    $region13: #{tpu_custom_call.1} parent=1 // pred_fallthru
      _
    // Predicated region
    $region14: #{tpu_custom_call.1} parent=1 // pred_check
      _
    $region15: #{tpu_custom_call.1} parent=1 // pred_check_branch
      %38 = sbr.rel (0) target = $region17
    $region16: #{tpu_custom_call.1} parent=1 // pred_region
      %39 = dma.done [#allocation6], 5120
    $region17: #{tpu_custom_call.1} parent=1 // pred_fallthru
      _
    %v41 = vld [vmem:[#allocation2] sm:$0xf]
    %v42 = vld [vmem:[#allocation2 + $0x4] sm:$0xf]
    %v43 = vld [vmem:[#allocation5] sm:$0xff]
    %v44 = vld [vmem:[#allocation5 + $0x8] sm:$0xff]
    %v45 = vld [vmem:[#allocation5 + $0x10] sm:$0xf]
    %v46 = vld [vmem:[#allocation5 + $0x14] sm:$0xff]
    %v47 = vld [vmem:[#allocation5 + $0x1c] sm:$0xff]
    %v48 = vld [vmem:[#allocation5 + $0x24] sm:$0xf]
    %v49 = vld [vmem:[#allocation5 + $0x28] sm:$0xff]
    %v50 = vld [vmem:[#allocation5 + $0x30] sm:$0xff]
    %v51 = vld [vmem:[#allocation5 + $0x38] sm:$0xf]
    %v52 = vld [vmem:[#allocation5 + $0x3c] sm:$0xff]
    %v53 = vld [vmem:[#allocation5 + $0x44] sm:$0xff]
    %v54 = vld [vmem:[#allocation5 + $0x4c] sm:$0xf]
    %v55 = vld [vmem:[#allocation5 + $0x50] sm:$0xff]
    %v56 = vld [vmem:[#allocation5 + $0x58] sm:$0xff]
    %v57 = vld [vmem:[#allocation5 + $0x60] sm:$0xf]
    %v58 = vld [vmem:[#allocation5 + $0x64] sm:$0xff]
    %v59 = vld [vmem:[#allocation5 + $0x6c] sm:$0xff]
    %v60 = vld [vmem:[#allocation5 + $0x74] sm:$0xf]
    %v61 = vld [vmem:[#allocation5 + $0x78] sm:$0xff]
    %v62 = vld [vmem:[#allocation5 + $0x80] sm:$0xff]
    %v63 = vld [vmem:[#allocation5 + $0x88] sm:$0xf]
    %v64 = vld [vmem:[#allocation5 + $0x8c] sm:$0xff]
    %v65 = vld [vmem:[#allocation5 + $0x94] sm:$0xff]
    %v66 = vld [vmem:[#allocation5 + $0x9c] sm:$0xf]
    %v67 = vld [vmem:[#allocation5 + $0xa0] sm:$0xff]
    %v68 = vld [vmem:[#allocation5 + $0xa8] sm:$0xff]
    %v69 = vld [vmem:[#allocation5 + $0xb0] sm:$0xf]
    %v70 = vld [vmem:[#allocation5 + $0xb4] sm:$0xff]
    %v71 = vld [vmem:[#allocation5 + $0xbc] sm:$0xff]
    %v72 = vld [vmem:[#allocation5 + $0xc4] sm:$0xf]
    %v73 = vld [vmem:[#allocation5 + $0xc8] sm:$0xff]
    %v74 = vld [vmem:[#allocation5 + $0xd0] sm:$0xff]
    %v75 = vld [vmem:[#allocation5 + $0xd8] sm:$0xf]
    %v76 = vld [vmem:[#allocation5 + $0xdc] sm:$0xff]
    %v77 = vld [vmem:[#allocation5 + $0xe4] sm:$0xff]
    %v78 = vld [vmem:[#allocation5 + $0xec] sm:$0xf]
    %v79 = vld [vmem:[#allocation5 + $0xf0] sm:$0xff]
    %v80 = vld [vmem:[#allocation5 + $0xf8] sm:$0xff]
    %v81 = vld [vmem:[#allocation5 + $0x100] sm:$0xf]
    %v82 = vld [vmem:[#allocation5 + $0x104] sm:$0xff]
    %v83 = vld [vmem:[#allocation5 + $0x10c] sm:$0xff]
    %v84 = vld [vmem:[#allocation5 + $0x114] sm:$0xf]
    %v85 = vld [vmem:[#allocation5 + $0x118] sm:$0xff]
    %v86 = vld [vmem:[#allocation5 + $0x120] sm:$0xff]
    %v87 = vld [vmem:[#allocation5 + $0x128] sm:$0xf]
    %v88 = vld [vmem:[#allocation5 + $0x12c] sm:$0xff]
    %v89 = vld [vmem:[#allocation5 + $0x134] sm:$0xff]
    %v90 = vld [vmem:[#allocation5 + $0x13c] sm:$0xf]
    %v93 = vunpack.c.l.b16 %v41
    %v94 = vunpack.c.l.b16 %v42
    %v95 = vpack.c.b16 %v94, %v93
    %v145 = vunpack.c.l.b16 %v43
    %v146 = vunpack.c.h.b16 %v43
    %v147 = vunpack.c.l.b16 %v44
    %v148 = vunpack.c.h.b16 %v44
    %v149 = vunpack.c.l.b16 %v45
    %v150 = vunpack.c.l.b16 %v46
    %v151 = vunpack.c.h.b16 %v46
    %v152 = vunpack.c.l.b16 %v47
    %v153 = vunpack.c.h.b16 %v47
    %v154 = vunpack.c.l.b16 %v48
    %v155 = vunpack.c.l.b16 %v49
    %v156 = vunpack.c.h.b16 %v49
    %v157 = vunpack.c.l.b16 %v50
    %v158 = vunpack.c.h.b16 %v50
    %v159 = vunpack.c.l.b16 %v51
    %v160 = vunpack.c.l.b16 %v52
    %v161 = vunpack.c.h.b16 %v52
    %v162 = vunpack.c.l.b16 %v53
    %v163 = vunpack.c.h.b16 %v53
    %v164 = vunpack.c.l.b16 %v54
    %v165 = vunpack.c.l.b16 %v55
    %v166 = vunpack.c.h.b16 %v55
    %v167 = vunpack.c.l.b16 %v56
    %v168 = vunpack.c.h.b16 %v56
    %v169 = vunpack.c.l.b16 %v57
    %v170 = vunpack.c.l.b16 %v58
    %v171 = vunpack.c.h.b16 %v58
    %v172 = vunpack.c.l.b16 %v59
    %v173 = vunpack.c.h.b16 %v59
    %v174 = vunpack.c.l.b16 %v60
    %v175 = vunpack.c.l.b16 %v61
    %v176 = vunpack.c.h.b16 %v61
    %v177 = vunpack.c.l.b16 %v62
    %v178 = vunpack.c.h.b16 %v62
    %v179 = vunpack.c.l.b16 %v63
    %v180 = vunpack.c.l.b16 %v64
    %v181 = vunpack.c.h.b16 %v64
    %v182 = vunpack.c.l.b16 %v65
    %v183 = vunpack.c.h.b16 %v65
    %v184 = vunpack.c.l.b16 %v66
    %v185 = vunpack.c.l.b16 %v67
    %v186 = vunpack.c.h.b16 %v67
    %v187 = vunpack.c.l.b16 %v68
    %v188 = vunpack.c.h.b16 %v68
    %v189 = vunpack.c.l.b16 %v69
    %v190 = vunpack.c.l.b16 %v70
    %v191 = vunpack.c.h.b16 %v70
    %v192 = vunpack.c.l.b16 %v71
    %v193 = vunpack.c.h.b16 %v71
    %v194 = vunpack.c.l.b16 %v72
    %v195 = vunpack.c.l.b16 %v73
    %v196 = vunpack.c.h.b16 %v73
    %v197 = vunpack.c.l.b16 %v74
    %v198 = vunpack.c.h.b16 %v74
    %v199 = vunpack.c.l.b16 %v75
    %v200 = vunpack.c.l.b16 %v76
    %v201 = vunpack.c.h.b16 %v76
    %v202 = vunpack.c.l.b16 %v77
    %v203 = vunpack.c.h.b16 %v77
    %v204 = vunpack.c.l.b16 %v78
    %v205 = vunpack.c.l.b16 %v79
    %v206 = vunpack.c.h.b16 %v79
    %v207 = vunpack.c.l.b16 %v80
    %v208 = vunpack.c.h.b16 %v80
    %v209 = vunpack.c.l.b16 %v81
    %v210 = vunpack.c.l.b16 %v82
    %v211 = vunpack.c.h.b16 %v82
    %v212 = vunpack.c.l.b16 %v83
    %v213 = vunpack.c.h.b16 %v83
    %v214 = vunpack.c.l.b16 %v84
    %v215 = vunpack.c.l.b16 %v85
    %v216 = vunpack.c.h.b16 %v85
    %v217 = vunpack.c.l.b16 %v86
    %v218 = vunpack.c.h.b16 %v86
    %v219 = vunpack.c.l.b16 %v87
    %v220 = vunpack.c.l.b16 %v88
    %v221 = vunpack.c.h.b16 %v88
    %v222 = vunpack.c.l.b16 %v89
    %v223 = vunpack.c.h.b16 %v89
    %v224 = vunpack.c.l.b16 %v90
    %v225 = vpack.c.b16 %v150, %v145
    %v226 = vpack.c.b16 %v151, %v146
    %v227 = vpack.c.b16 %v152, %v147
    %v228 = vpack.c.b16 %v153, %v148
    %v229 = vpack.c.b16 %v154, %v149
    %v230 = vpack.c.b16 %v160, %v155
    %v231 = vpack.c.b16 %v161, %v156
    %v232 = vpack.c.b16 %v162, %v157
    %v233 = vpack.c.b16 %v163, %v158
    %v234 = vpack.c.b16 %v164, %v159
    %v235 = vpack.c.b16 %v170, %v165
    %v236 = vpack.c.b16 %v171, %v166
    %v237 = vpack.c.b16 %v172, %v167
    %v238 = vpack.c.b16 %v173, %v168
    %v239 = vpack.c.b16 %v174, %v169
    %v240 = vpack.c.b16 %v180, %v175
    %v241 = vpack.c.b16 %v181, %v176
    %v242 = vpack.c.b16 %v182, %v177
    %v243 = vpack.c.b16 %v183, %v178
    %v244 = vpack.c.b16 %v184, %v179
    %v245 = vpack.c.b16 %v190, %v185
    %v246 = vpack.c.b16 %v191, %v186
    %v247 = vpack.c.b16 %v192, %v187
    %v248 = vpack.c.b16 %v193, %v188
    %v249 = vpack.c.b16 %v194, %v189
    %v250 = vpack.c.b16 %v200, %v195
    %v251 = vpack.c.b16 %v201, %v196
    %v252 = vpack.c.b16 %v202, %v197
    %v253 = vpack.c.b16 %v203, %v198
    %v254 = vpack.c.b16 %v204, %v199
    %v255 = vpack.c.b16 %v210, %v205
    %v256 = vpack.c.b16 %v211, %v206
    %v257 = vpack.c.b16 %v212, %v207
    %v258 = vpack.c.b16 %v213, %v208
    %v259 = vpack.c.b16 %v214, %v209
    %v260 = vpack.c.b16 %v220, %v215
    %v261 = vpack.c.b16 %v221, %v216
    %v262 = vpack.c.b16 %v222, %v217
    %v263 = vpack.c.b16 %v223, %v218
    %v264 = vpack.c.b16 %v224, %v219
    %305 = vmatprep.subr.bf16.mxu0 %v226
    %306 = vmatpush1.bf16.msra.mxu0 %v225
    %307 = vmatprep.subr.bf16.mxu0 %v231
    %308 = vmatpush1.bf16.msra.mxu0 %v230
    %309 = vmatprep.subr.bf16.mxu0 %v236
    %310 = vmatpush1.bf16.msra.mxu0 %v235
    %311 = vmatprep.subr.bf16.mxu0 %v241
    %312 = vmatpush1.bf16.msra.mxu0 %v240
    %313 = vmatprep.subr.bf16.mxu0 %v246
    %314 = vmatpush1.bf16.msra.mxu0 %v245
    %315 = vmatprep.subr.bf16.mxu0 %v251
    %316 = vmatpush1.bf16.msra.mxu0 %v250
    %317 = vmatprep.subr.bf16.mxu0 %v256
    %318 = vmatpush1.bf16.msra.mxu0 %v255
    %319 = vmatprep.subr.bf16.mxu0 %v261
    %320 = vmatpush1.bf16.msra.mxu0 %v260
    %321 = vmatprep.subr.bf16.mxu0 0
    %322 = vmatpush1.bf16.msra.mxu0 0
    %323 = vmatprep.subr.bf16.mxu0 0
    %324 = vmatpush1.bf16.msra.mxu0 0
    %325 = vmatprep.subr.bf16.mxu0 0
    %326 = vmatpush1.bf16.msra.mxu0 0
    %327 = vmatprep.subr.bf16.mxu0 0
    %328 = vmatpush1.bf16.msra.mxu0 0
    %329 = vmatprep.subr.bf16.mxu0 0
    %330 = vmatpush1.bf16.msra.mxu0 0
    %331 = vmatprep.subr.bf16.mxu0 0
    %332 = vmatpush1.bf16.msra.mxu0 0
    %333 = vmatprep.subr.bf16.mxu0 0
    %334 = vmatpush1.bf16.msra.mxu0 0
    %335 = vmatprep.subr.bf16.mxu0 0
    %336 = vmatpush1.bf16.msra.mxu0 0
    %337 = vmatprep.mubr.bf16.mxu0 0
    %338 = vmatmul.mubr.bf16.gmra.mrb[0].mxu0 %v95
    %v339 = vpop.f32.mrb[0].mxu0
    %v340 = vadd.f32 0.0, %v339
    %v341 = vpop.f32.mrb[0].mxu0
    %v342 = vadd.f32 0.0, %v341
    %v343 = vpop.f32.mrb[0].mxu0
    %v344 = vadd.f32 0.0, %v343
    %v345 = vpop.f32.mrb[0].mxu0
    %v346 = vadd.f32 0.0, %v345
    %347 = vdwg.mxu0
    %348 = vmatprep.subr.bf16.mxu0 %v228
    %349 = vmatpush1.bf16.msra.mxu0 %v227
    %350 = vmatprep.subr.bf16.mxu0 %v233
    %351 = vmatpush1.bf16.msra.mxu0 %v232
    %352 = vmatprep.subr.bf16.mxu0 %v238
    %353 = vmatpush1.bf16.msra.mxu0 %v237
    %354 = vmatprep.subr.bf16.mxu0 %v243
    %355 = vmatpush1.bf16.msra.mxu0 %v242
    %356 = vmatprep.subr.bf16.mxu0 %v248
    %357 = vmatpush1.bf16.msra.mxu0 %v247
    %358 = vmatprep.subr.bf16.mxu0 %v253
    %359 = vmatpush1.bf16.msra.mxu0 %v252
    %360 = vmatprep.subr.bf16.mxu0 %v258
    %361 = vmatpush1.bf16.msra.mxu0 %v257
    %362 = vmatprep.subr.bf16.mxu0 %v263
    %363 = vmatpush1.bf16.msra.mxu0 %v262
    %364 = vmatprep.subr.bf16.mxu0 0
    %365 = vmatpush1.bf16.msra.mxu0 0
    %366 = vmatprep.subr.bf16.mxu0 0
    %367 = vmatpush1.bf16.msra.mxu0 0
    %368 = vmatprep.subr.bf16.mxu0 0
    %369 = vmatpush1.bf16.msra.mxu0 0
    %370 = vmatprep.subr.bf16.mxu0 0
    %371 = vmatpush1.bf16.msra.mxu0 0
    %372 = vmatprep.subr.bf16.mxu0 0
    %373 = vmatpush1.bf16.msra.mxu0 0
    %374 = vmatprep.subr.bf16.mxu0 0
    %375 = vmatpush1.bf16.msra.mxu0 0
    %376 = vmatprep.subr.bf16.mxu0 0
    %377 = vmatpush1.bf16.msra.mxu0 0
    %378 = vmatprep.subr.bf16.mxu0 0
    %379 = vmatpush1.bf16.msra.mxu0 0
    %380 = vmatprep.mubr.bf16.mxu0 0
    %381 = vmatmul.mubr.bf16.gmra.mrb[0].mxu0 %v95
    %v382 = vpop.f32.mrb[0].mxu0
    %v383 = vadd.f32 0.0, %v382
    %v384 = vpop.f32.mrb[0].mxu0
    %v385 = vadd.f32 0.0, %v384
    %v386 = vpop.f32.mrb[0].mxu0
    %v387 = vadd.f32 0.0, %v386
    %v388 = vpop.f32.mrb[0].mxu0
    %v389 = vadd.f32 0.0, %v388
    %390 = vdwg.mxu0
    %391 = vmatprep.subr.bf16.mxu0 0
    %392 = vmatpush1.bf16.msra.mxu0 %v229
    %393 = vmatprep.subr.bf16.mxu0 0
    %394 = vmatpush1.bf16.msra.mxu0 %v234
    %395 = vmatprep.subr.bf16.mxu0 0
    %396 = vmatpush1.bf16.msra.mxu0 %v239
    %397 = vmatprep.subr.bf16.mxu0 0
    %398 = vmatpush1.bf16.msra.mxu0 %v244
    %399 = vmatprep.subr.bf16.mxu0 0
    %400 = vmatpush1.bf16.msra.mxu0 %v249
    %401 = vmatprep.subr.bf16.mxu0 0
    %402 = vmatpush1.bf16.msra.mxu0 %v254
    %403 = vmatprep.subr.bf16.mxu0 0
    %404 = vmatpush1.bf16.msra.mxu0 %v259
    %405 = vmatprep.subr.bf16.mxu0 0
    %406 = vmatpush1.bf16.msra.mxu0 %v264
    %407 = vmatprep.subr.bf16.mxu0 0
    %408 = vmatpush1.bf16.msra.mxu0 0
    %409 = vmatprep.subr.bf16.mxu0 0
    %410 = vmatpush1.bf16.msra.mxu0 0
    %411 = vmatprep.subr.bf16.mxu0 0
    %412 = vmatpush1.bf16.msra.mxu0 0
    %413 = vmatprep.subr.bf16.mxu0 0
    %414 = vmatpush1.bf16.msra.mxu0 0
    %415 = vmatprep.subr.bf16.mxu0 0
    %416 = vmatpush1.bf16.msra.mxu0 0
    %417 = vmatprep.subr.bf16.mxu0 0
    %418 = vmatpush1.bf16.msra.mxu0 0
    %419 = vmatprep.subr.bf16.mxu0 0
    %420 = vmatpush1.bf16.msra.mxu0 0
    %421 = vmatprep.subr.bf16.mxu0 0
    %422 = vmatpush1.bf16.msra.mxu0 0
    %423 = vmatprep.mubr.bf16.mxu0 0
    %424 = vmatmul.mubr.bf16.gmra.mrb[0].mxu0 %v95
    %v425 = vpop.f32.mrb[0].mxu0
    %v426 = vadd.f32 0.0, %v425
    %v427 = vpop.f32.mrb[0].mxu0
    %v428 = vpop.f32.mrb[0].mxu0
    %v429 = vadd.f32 0.0, %v428
    %v430 = vpop.f32.mrb[0].mxu0
    %431 = vdwg.mxu0
    %v432 = vpack.c.bf16 %v340, %v340
    %v433 = vpack.c.bf16 %v344, %v344
    %434 = vst [vmem:[#allocation7] sm:$0xf] %v432
    %435 = vst [vmem:[#allocation7 + $0x14] sm:$0xf] %v433
    %v436 = vpack.c.bf16 %v342, %v342
    %v437 = vpack.c.bf16 %v346, %v346
    %s438 = scalar_lea.vmem [#allocation7], 4
    %439 = vst [vmem:[%s438] sm:$0xf] %v436
    %440 = vst [vmem:[%s438 + $0x14] sm:$0xf] %v437
    %v441 = vpack.c.bf16 %v383, %v383
    %v442 = vpack.c.bf16 %v387, %v387
    %s443 = scalar_lea.vmem [#allocation7], 8
    %444 = vst [vmem:[%s443] sm:$0xf] %v441
    %445 = vst [vmem:[%s443 + $0x14] sm:$0xf] %v442
    %v446 = vpack.c.bf16 %v385, %v385
    %v447 = vpack.c.bf16 %v389, %v389
    %s448 = scalar_lea.vmem [#allocation7], 12
    %449 = vst [vmem:[%s448] sm:$0xf] %v446
    %450 = vst [vmem:[%s448 + $0x14] sm:$0xf] %v447
    %v451 = vpack.c.bf16 %v426, %v426
    %v452 = vpack.c.bf16 %v429, %v429
    %s453 = scalar_lea.vmem [#allocation7], 16
    %454 = vst [vmem:[%s453] sm:$0xf] %v451
    %455 = vst [vmem:[%s453 + $0x14] sm:$0xf] %v452
    // Predicated region
    $region18: #{tpu_custom_call.1} parent=1 // pred_check
      _
    $region19: #{tpu_custom_call.1} parent=1 // pred_check_branch
      %457 = sbr.rel (0) target = $region21
    $region20: #{tpu_custom_call.1} parent=1 // pred_region
      %s459 = ssub.s32 640, 640
      %460 = vsyncadd [#allocation4], %s459
      %s461 = sshll.u32 [#allocation7], 4
      %s462 = int_to_ptr.vmem [resolvable:$true] %s461
      %467 = dma.vmem_to_hbm [thread:$0]  %s462, 640, %s2, [#allocation4], 64, 64, 4
    $region21: #{tpu_custom_call.1} parent=1 // pred_fallthru
      _
    // Predicated region
    $region22: #{tpu_custom_call.1} parent=1 // pred_check
      _
    $region23: #{tpu_custom_call.1} parent=1 // pred_check_branch
      %469 = sbr.rel (0) target = $region25
    $region24: #{tpu_custom_call.1} parent=1 // pred_region
      %470 = dma.done [#allocation4], 640
    $region25: #{tpu_custom_call.1} parent=1 // pred_fallthru
      _
    %471 = vsyncpa [#allocation3], 1
    %472 = vsyncpa [#allocation6], 1
    %473 = vsyncpa [#allocation4], 1

</llo_original>
